<compile_context>
chip_gen: v7x
topology: tpu7x:2x2x1
jax: 0.10.0
libtpu: 0.0.40
codegen_flags: <defaults>
</compile_context>

<pallas_src>
import jax
import jax.numpy as jnp
from jax.experimental import pallas as pl
from jax.experimental.pallas import tpu as pltpu

NEG_SLOPE = 0.01  # F.leaky_relu_ default negative_slope


def _round_up(x, m):
    return ((x + m - 1) // m) * m


def _leaky_relu(h):
    return jnp.where(h > 0, h, NEG_SLOPE * h)


def _vmem_capacity_bytes():
    """Per-TensorCore VMEM capacity; conservative 64 MiB fallback (v7x-sized)."""
    try:
        info = pltpu.get_tpu_info()
        for attr in ("vmem_capacity_bytes", "vmem_size_bytes", "vmem_bytes"):
            cap = getattr(info, attr, None)
            if cap:
                return int(cap)
    except Exception:
        pass
    return 64 << 20


# --------------------------------------------------------------------------- #
# Kernels
# --------------------------------------------------------------------------- #
def _layer1_kernel(a_ref, x_ref, w1t_ref, b1_ref, w2t_ref, o_ref, acc_ref):
    """o = leaky_relu((sum_k A[i,k] @ X[k]) @ W1^T + b1) @ W2^T   (bf16 out).

    Layer-2's premultiply is fused into the finalize step so the activated
    hidden tile never leaves VMEM.
    """
    k = pl.program_id(1)

    @pl.when(k == 0)
    def _():
        acc_ref[...] = jnp.zeros_like(acc_ref)

    acc_ref[...] += jnp.dot(a_ref[...], x_ref[...],
                            preferred_element_type=jnp.float32)

    @pl.when(k == pl.num_programs(1) - 1)
    def _():
        h = jnp.dot(acc_ref[...].astype(w1t_ref.dtype), w1t_ref[...],
                    preferred_element_type=jnp.float32) + b1_ref[...]
        h = _leaky_relu(h)
        m2 = jnp.dot(h.astype(w2t_ref.dtype), w2t_ref[...],
                     preferred_element_type=jnp.float32)
        o_ref[...] = m2.astype(o_ref.dtype)


def _layer2_kernel(a_ref, m2_ref, b2_ref, o_ref):
    """o = leaky_relu(sum_k A[i,k] @ (h W2^T)[k] + b2)   (f32 out).

    Output block index is constant along k, so the f32 output tile stays
    resident in VMEM and doubles as the accumulator (no scratch).
    """
    k = pl.program_id(1)

    @pl.when(k == 0)
    def _():
        o_ref[...] = jnp.zeros_like(o_ref)

    o_ref[...] += jnp.dot(a_ref[...], m2_ref[...],
                          preferred_element_type=jnp.float32)

    @pl.when(k == pl.num_programs(1) - 1)
    def _():
        o_ref[...] = _leaky_relu(o_ref[...] + b2_ref[...])


# --------------------------------------------------------------------------- #
# Forward pass
# --------------------------------------------------------------------------- #
def gcn_forward(A, X, W1, b1, W2, b2, *, tile=512, compute_dtype=jnp.bfloat16):
    """Two-layer GCN forward: leaky_relu(A @ leaky_relu(A @ X @ W1^T + b1) @ W2^T + b2)."""
    N, d = X.shape
    H = W1.shape[0]
    assert A.shape == (N, N) and W1.shape == (H, d)
    assert W2.shape == (d, H) and b1.shape == (H,) and b2.shape == (d,)

    bpe = jnp.dtype(compute_dtype).itemsize
    Dp = _round_up(d, 128)   # padded in/out feature width (lane-dense stores)
    HP = _round_up(H, 128)   # padded hidden width

    # ---- per-generation VMEM budget (headroom for Mosaic internal scratch) ----
    cap = _vmem_capacity_bytes()
    budget = max(((cap - (8 << 20)) * 7) // 8, 24 << 20)
    # 64 MiB parts (v7x) -> ~49 MiB; 128 MiB parts (v5e/v6e) -> ~105 MiB.

    # Conservative estimates: Pallas double-buffers EVERY in/out spec, including
    # the constant-index "resident" W^T / bias specs.
    def l1_bytes(t):
        return (2 * t * t * bpe        # A tile
                + 2 * t * Dp * bpe     # X K-tile
                + 2 * Dp * HP * bpe    # W1^T (resident, still double-buffered)
                + 2 * HP * 4           # b1
                + 2 * HP * Dp * bpe    # W2^T
                + 2 * t * Dp * bpe     # bf16 output tile
                + t * Dp * 4)          # f32 accumulator scratch

    def l2_bytes(t):
        return (2 * t * t * bpe        # A tile
                + 2 * t * Dp * bpe     # premultiplied-operand K-tile
                + 2 * Dp * 4           # b2
                + 2 * t * Dp * 4)      # resident f32 output (= accumulator)

    def fits(t):
        return max(l1_bytes(t), l2_bytes(t)) <= budget

    # ---- tile selection --------------------------------------------------------
    full = _round_up(max(N, 1), 8)
    if full <= tile:
        tile = full                      # tiny graph: one row tile covers everything
    else:
        # keep >= 2 row tiles so the "parallel" axis can split across TensorCores
        while tile > 256 and _round_up(N, tile) < 2 * tile:
            tile //= 2
        # shrink until the conservative VMEM estimate fits the budget
        # (for extremely large feature dims one would also tile W along Din)
        while tile > 128 and not fits(tile):
            tile //= 2
    Np = _round_up(N, tile)
    grid = (Np // tile, Np // tile)

    # ---- pad + cast operands ONCE (A reused by both layers) ---------------------
    A_p = jnp.zeros((Np, Np), compute_dtype).at[:N, :N].set(A.astype(compute_dtype))
    X_p = jnp.zeros((Np, Dp), compute_dtype).at[:N, :d].set(X.astype(compute_dtype))
    W1t = jnp.zeros((Dp, HP), compute_dtype).at[:d, :H].set(W1.T.astype(compute_dtype))
    b1p = jnp.zeros((1, HP), jnp.float32).at[:, :H].set(
        b1.reshape(1, H).astype(jnp.float32))
    W2t = jnp.zeros((HP, Dp), compute_dtype).at[:H, :d].set(W2.T.astype(compute_dtype))
    b2p = jnp.zeros((1, Dp), jnp.float32).at[:, :d].set(
        b2.reshape(1, d).astype(jnp.float32))

    def vmem_limit(est):
        return int(min(max(est + (4 << 20), 32 << 20), budget))

    # ---- layer 1 (+ fused layer-2 premultiply), bf16 intermediate ---------------
    m2 = pl.pallas_call(
        _layer1_kernel,
        out_shape=jax.ShapeDtypeStruct((Np, Dp), compute_dtype),
        grid_spec=pltpu.PrefetchScalarGridSpec(
            num_scalar_prefetch=0,
            grid=grid,
            in_specs=[
                pl.BlockSpec((tile, tile), lambda i, k: (i, k)),  # A tile
                pl.BlockSpec((tile, Dp), lambda i, k: (k, 0)),    # X K-tile
                pl.BlockSpec((Dp, HP), lambda i, k: (0, 0)),      # W1^T (resident)
                pl.BlockSpec((1, HP), lambda i, k: (0, 0)),       # b1   (resident)
                pl.BlockSpec((HP, Dp), lambda i, k: (0, 0)),      # W2^T (resident)
            ],
            out_specs=pl.BlockSpec((tile, Dp), lambda i, k: (i, 0)),
            scratch_shapes=[pltpu.VMEM((tile, Dp), jnp.float32)],
        ),
        compiler_params=pltpu.CompilerParams(
            dimension_semantics=("parallel", "arbitrary"),
            vmem_limit_bytes=vmem_limit(l1_bytes(tile)),
        ),
    )(A_p, X_p, W1t, b1p, W2t)

    # ---- layer 2: leaky_relu(A @ (h W2^T) + b2), f32 output-resident accumulation
    y_p = pl.pallas_call(
        _layer2_kernel,
        out_shape=jax.ShapeDtypeStruct((Np, Dp), jnp.float32),
        grid_spec=pltpu.PrefetchScalarGridSpec(
            num_scalar_prefetch=0,
            grid=grid,
            in_specs=[
                pl.BlockSpec((tile, tile), lambda i, k: (i, k)),  # A tile
                pl.BlockSpec((tile, Dp), lambda i, k: (k, 0)),    # (h W2^T) K-tile
                pl.BlockSpec((1, Dp), lambda i, k: (0, 0)),       # b2 (resident)
            ],
            out_specs=pl.BlockSpec((tile, Dp), lambda i, k: (i, 0)),
        ),
        compiler_params=pltpu.CompilerParams(
            dimension_semantics=("parallel", "arbitrary"),
            vmem_limit_bytes=vmem_limit(l2_bytes(tile)),
        ),
    )(A_p, m2, b2p)

    return y_p[:N, :d]


# --------------------------------------------------------------------------- #
# Reference + demo
# --------------------------------------------------------------------------- #
def _xavier_normal(key, shape):
    # nn.init.xavier_normal_ on a (fan_out, fan_in) Linear weight
    fan_out, fan_in = shape
    std = (2.0 / (fan_in + fan_out)) ** 0.5
    return std * jax.random.normal(key, shape, dtype=jnp.float32)


def _reference(A, X, W1, b1, W2, b2):
    h = _leaky_relu(jnp.matmul(A, X) @ W1.T + b1)
    return _leaky_relu(jnp.matmul(A, h) @ W2.T + b2)


if __name__ == "__main__":
    N, D, H = 16, 32, 64   # nodes, feature dim d, layer1_out_dim
    key = jax.random.PRNGKey(0)
    k_a, k_x, k_w1, k_b1, k_w2, k_b2 = jax.random.split(key, 6)

    # synthetic (row-normalized) adjacency matrix
    A_raw = (jax.random.uniform(k_a, (N, N)) > 0.5).astype(jnp.float32)
    A = A_raw / jnp.maximum(A_raw.sum(axis=1, keepdims=True), 1.0)

    X = jax.random.normal(k_x, (N, D), dtype=jnp.float32)

    W1 = _xavier_normal(k_w1, (H, D))
    b1 = 0.01 * jax.random.normal(k_b1, (H,), dtype=jnp.float32)
    W2 = _xavier_normal(k_w2, (D, H))
    b2 = 0.01 * jax.random.normal(k_b2, (D,), dtype=jnp.float32)

    out = jax.jit(gcn_forward)(A, X, W1, b1, W2, b2)
    out = jax.block_until_ready(out)

    ref = _reference(A, X, W1, b1, W2, b2)
    assert out.shape == (N, D)
    # bf16 matmul operands / bf16 intermediate with f32 accumulation -> loose tolerance
    assert jnp.allclose(out, ref, atol=5e-2, rtol=5e-2), "mismatch vs. reference"

    print("KERNEL_OK")
</pallas_src>

<mosaic_0001>
module attributes {stable_mosaic.version = 11 : i64} {
  func.func @_layer1_kernel(%arg0: i32, %arg1: i32, %arg2: memref<16x16xbf16, #tpu.memory_space<vmem>>, %arg3: memref<16x128xbf16, #tpu.memory_space<vmem>>, %arg4: memref<128x128xbf16, #tpu.memory_space<vmem>>, %arg5: memref<1x128xf32, #tpu.memory_space<vmem>>, %arg6: memref<128x128xbf16, #tpu.memory_space<vmem>>, %arg7: memref<16x128xbf16, #tpu.memory_space<vmem>>, %arg8: memref<16x128xf32, #tpu.memory_space<vmem>>) attributes {dimension_semantics = [#tpu.dimension_semantics<parallel>, #tpu.dimension_semantics<arbitrary>], iteration_bounds = array<i64: 1, 1>, scalar_prefetch = 0 : i64, scratch_operands = 1 : i64, tpu.core_type = #tpu.core_type<tc>, window_params = [{transform_indices = @transform_0, window_bounds = array<i64: 16, 16>}, {transform_indices = @transform_1, window_bounds = array<i64: 16, 128>}, {pipeline_mode = #tpu.pipeline_mode<synchronous>, transform_indices = @transform_2, window_bounds = array<i64: 128, 128>}, {pipeline_mode = #tpu.pipeline_mode<synchronous>, transform_indices = @transform_3, window_bounds = array<i64: 1, 128>}, {pipeline_mode = #tpu.pipeline_mode<synchronous>, transform_indices = @transform_4, window_bounds = array<i64: 128, 128>}, {transform_indices = @transform_5, window_bounds = array<i64: 16, 128>}]} {
    %c0_i32 = arith.constant 0 : i32
    %0 = arith.cmpi eq, %arg1, %c0_i32 : i32
    %1 = arith.extui %0 : i1 to i32
    %c0_i32_0 = arith.constant 0 : i32
    %2 = arith.cmpi ne, %1, %c0_i32_0 : i32
    scf.if %2 {
      %cst_10 = arith.constant 0.000000e+00 : f32
      %12 = vector.broadcast %cst_10 : f32 to vector<16x128xf32>
      %c0_11 = arith.constant 0 : index
      %c0_12 = arith.constant 0 : index
      %13 = vector.load %arg8[%c0_11, %c0_12] : memref<16x128xf32, #tpu.memory_space<vmem>>, vector<16x128xf32>
      tpu.vector_store %arg8[%c0_11, %c0_12], %12 {strides = array<i32>} : memref<16x128xf32, #tpu.memory_space<vmem>>, vector<16x128xf32>,
    } else {
    }
    %c0 = arith.constant 0 : index
    %c0_1 = arith.constant 0 : index
    %3 = vector.load %arg8[%c0, %c0_1] : memref<16x128xf32, #tpu.memory_space<vmem>>, vector<16x128xf32>
    %c0_2 = arith.constant 0 : index
    %c0_3 = arith.constant 0 : index
    %4 = vector.load %arg2[%c0_2, %c0_3] : memref<16x16xbf16, #tpu.memory_space<vmem>>, vector<16x16xbf16>
    %c0_4 = arith.constant 0 : index
    %c0_5 = arith.constant 0 : index
    %5 = vector.load %arg3[%c0_4, %c0_5] : memref<16x128xbf16, #tpu.memory_space<vmem>>, vector<16x128xbf16>
    %cst = arith.constant dense<0.000000e+00> : vector<16x128xf32>
    %6 = tpu.matmul %4, %5, %cst {dimension_numbers = #tpu.dot_dimension_numbers<[1], [0], [0], [1], [0, 0, 1, 1], [], []>} : vector<16x16xbf16>, vector<16x128xbf16>, vector<16x128xf32> -> vector<16x128xf32>
    %7 = arith.addf %3, %6 : vector<16x128xf32>
    %c0_6 = arith.constant 0 : index
    %c0_7 = arith.constant 0 : index
    %8 = vector.load %arg8[%c0_6, %c0_7] : memref<16x128xf32, #tpu.memory_space<vmem>>, vector<16x128xf32>
    tpu.vector_store %arg8[%c0_6, %c0_7], %7 {strides = array<i32>} : memref<16x128xf32, #tpu.memory_space<vmem>>, vector<16x128xf32>,
    %c0_i32_8 = arith.constant 0 : i32
    %9 = arith.cmpi eq, %arg1, %c0_i32_8 : i32
    %10 = arith.extui %9 : i1 to i32
    %c0_i32_9 = arith.constant 0 : i32
    %11 = arith.cmpi ne, %10, %c0_i32_9 : i32
    scf.if %11 {
      %c0_10 = arith.constant 0 : index
      %c0_11 = arith.constant 0 : index
      %12 = vector.load %arg8[%c0_10, %c0_11] : memref<16x128xf32, #tpu.memory_space<vmem>>, vector<16x128xf32>
      %13 = arith.truncf %12 : vector<16x128xf32> to vector<16x128xbf16>
      %c0_12 = arith.constant 0 : index
      %c0_13 = arith.constant 0 : index
      %14 = vector.load %arg4[%c0_12, %c0_13] : memref<128x128xbf16, #tpu.memory_space<vmem>>, vector<128x128xbf16>
      %cst_14 = arith.constant dense<0.000000e+00> : vector<16x128xf32>
      %15 = tpu.matmul %13, %14, %cst_14 {dimension_numbers = #tpu.dot_dimension_numbers<[1], [0], [0], [1], [0, 0, 1, 1], [], []>} : vector<16x128xbf16>, vector<128x128xbf16>, vector<16x128xf32> -> vector<16x128xf32>
      %c0_15 = arith.constant 0 : index
      %c0_16 = arith.constant 0 : index
      %16 = vector.load %arg5[%c0_15, %c0_16] : memref<1x128xf32, #tpu.memory_space<vmem>>, vector<1x128xf32>
      %17 = vector.broadcast %16 : vector<1x128xf32> to vector<16x128xf32>
      %18 = arith.addf %15, %17 : vector<16x128xf32>
      %cst_17 = arith.constant 0.000000e+00 : f32
      %19 = vector.broadcast %cst_17 : f32 to vector<16x128xf32>
      %20 = arith.cmpf ogt, %18, %19 : vector<16x128xf32>
      %cst_18 = arith.constant 0.00999999977 : f32
      %21 = vector.broadcast %cst_18 : f32 to vector<16x128xf32>
      %22 = arith.mulf %21, %18 : vector<16x128xf32>
      %23 = arith.select %20, %18, %22 : vector<16x128xi1>, vector<16x128xf32>
      %24 = arith.truncf %23 : vector<16x128xf32> to vector<16x128xbf16>
      %c0_19 = arith.constant 0 : index
      %c0_20 = arith.constant 0 : index
      %25 = vector.load %arg6[%c0_19, %c0_20] : memref<128x128xbf16, #tpu.memory_space<vmem>>, vector<128x128xbf16>
      %cst_21 = arith.constant dense<0.000000e+00> : vector<16x128xf32>
      %26 = tpu.matmul %24, %25, %cst_21 {dimension_numbers = #tpu.dot_dimension_numbers<[1], [0], [0], [1], [0, 0, 1, 1], [], []>} : vector<16x128xbf16>, vector<128x128xbf16>, vector<16x128xf32> -> vector<16x128xf32>
      %27 = arith.truncf %26 : vector<16x128xf32> to vector<16x128xbf16>
      %c0_22 = arith.constant 0 : index
      %c0_23 = arith.constant 0 : index
      %28 = vector.load %arg7[%c0_22, %c0_23] : memref<16x128xbf16, #tpu.memory_space<vmem>>, vector<16x128xbf16>
      tpu.vector_store %arg7[%c0_22, %c0_23], %27 {strides = array<i32>} : memref<16x128xbf16, #tpu.memory_space<vmem>>, vector<16x128xbf16>,
    } else {
    }
    return
  }
  func.func @transform_0(%arg0: i32, %arg1: i32) -> (i32, i32) {
    %c0_i32 = arith.constant 0 : i32
    return %arg0, %arg1 : i32, i32
  }
  func.func @transform_1(%arg0: i32, %arg1: i32) -> (i32, i32) {
    %c0_i32 = arith.constant 0 : i32
    %c0_i32_0 = arith.constant 0 : i32
    return %arg1, %c0_i32 : i32, i32
  }
  func.func @transform_2(%arg0: i32, %arg1: i32) -> (i32, i32) {
    %c0_i32 = arith.constant 0 : i32
    %c0_i32_0 = arith.constant 0 : i32
    %c0_i32_1 = arith.constant 0 : i32
    return %c0_i32, %c0_i32_0 : i32, i32
  }
  func.func @transform_3(%arg0: i32, %arg1: i32) -> (i32, i32) {
    %c0_i32 = arith.constant 0 : i32
    %c0_i32_0 = arith.constant 0 : i32
    %c0_i32_1 = arith.constant 0 : i32
    return %c0_i32, %c0_i32_0 : i32, i32
  }
  func.func @transform_4(%arg0: i32, %arg1: i32) -> (i32, i32) {
    %c0_i32 = arith.constant 0 : i32
    %c0_i32_0 = arith.constant 0 : i32
    %c0_i32_1 = arith.constant 0 : i32
    return %c0_i32, %c0_i32_0 : i32, i32
  }
  func.func @transform_5(%arg0: i32, %arg1: i32) -> (i32, i32) {
    %c0_i32 = arith.constant 0 : i32
    %c0_i32_0 = arith.constant 0 : i32
    return %arg0, %c0_i32 : i32, i32
  }
}

module attributes {stable_mosaic.version = 11 : i64} {
  func.func @_layer2_kernel(%arg0: i32, %arg1: i32, %arg2: memref<16x16xbf16, #tpu.memory_space<vmem>>, %arg3: memref<16x128xbf16, #tpu.memory_space<vmem>>, %arg4: memref<1x128xf32, #tpu.memory_space<vmem>>, %arg5: memref<16x128xf32, #tpu.memory_space<vmem>>) attributes {dimension_semantics = [#tpu.dimension_semantics<parallel>, #tpu.dimension_semantics<arbitrary>], iteration_bounds = array<i64: 1, 1>, scalar_prefetch = 0 : i64, scratch_operands = 0 : i64, tpu.core_type = #tpu.core_type<tc>, window_params = [{transform_indices = @transform_0, window_bounds = array<i64: 16, 16>}, {transform_indices = @transform_1, window_bounds = array<i64: 16, 128>}, {pipeline_mode = #tpu.pipeline_mode<synchronous>, transform_indices = @transform_2, window_bounds = array<i64: 1, 128>}, {transform_indices = @transform_3, window_bounds = array<i64: 16, 128>}]} {
    %c0_i32 = arith.constant 0 : i32
    %0 = arith.cmpi eq, %arg1, %c0_i32 : i32
    %1 = arith.extui %0 : i1 to i32
    %c0_i32_0 = arith.constant 0 : i32
    %2 = arith.cmpi ne, %1, %c0_i32_0 : i32
    scf.if %2 {
      %cst_10 = arith.constant 0.000000e+00 : f32
      %12 = vector.broadcast %cst_10 : f32 to vector<16x128xf32>
      %c0_11 = arith.constant 0 : index
      %c0_12 = arith.constant 0 : index
      %13 = vector.load %arg5[%c0_11, %c0_12] : memref<16x128xf32, #tpu.memory_space<vmem>>, vector<16x128xf32>
      tpu.vector_store %arg5[%c0_11, %c0_12], %12 {strides = array<i32>} : memref<16x128xf32, #tpu.memory_space<vmem>>, vector<16x128xf32>,
    } else {
    }
    %c0 = arith.constant 0 : index
    %c0_1 = arith.constant 0 : index
    %3 = vector.load %arg5[%c0, %c0_1] : memref<16x128xf32, #tpu.memory_space<vmem>>, vector<16x128xf32>
    %c0_2 = arith.constant 0 : index
    %c0_3 = arith.constant 0 : index
    %4 = vector.load %arg2[%c0_2, %c0_3] : memref<16x16xbf16, #tpu.memory_space<vmem>>, vector<16x16xbf16>
    %c0_4 = arith.constant 0 : index
    %c0_5 = arith.constant 0 : index
    %5 = vector.load %arg3[%c0_4, %c0_5] : memref<16x128xbf16, #tpu.memory_space<vmem>>, vector<16x128xbf16>
    %cst = arith.constant dense<0.000000e+00> : vector<16x128xf32>
    %6 = tpu.matmul %4, %5, %cst {dimension_numbers = #tpu.dot_dimension_numbers<[1], [0], [0], [1], [0, 0, 1, 1], [], []>} : vector<16x16xbf16>, vector<16x128xbf16>, vector<16x128xf32> -> vector<16x128xf32>
    %7 = arith.addf %3, %6 : vector<16x128xf32>
    %c0_6 = arith.constant 0 : index
    %c0_7 = arith.constant 0 : index
    %8 = vector.load %arg5[%c0_6, %c0_7] : memref<16x128xf32, #tpu.memory_space<vmem>>, vector<16x128xf32>
    tpu.vector_store %arg5[%c0_6, %c0_7], %7 {strides = array<i32>} : memref<16x128xf32, #tpu.memory_space<vmem>>, vector<16x128xf32>,
    %c0_i32_8 = arith.constant 0 : i32
    %9 = arith.cmpi eq, %arg1, %c0_i32_8 : i32
    %10 = arith.extui %9 : i1 to i32
    %c0_i32_9 = arith.constant 0 : i32
    %11 = arith.cmpi ne, %10, %c0_i32_9 : i32
    scf.if %11 {
      %c0_10 = arith.constant 0 : index
      %c0_11 = arith.constant 0 : index
      %12 = vector.load %arg5[%c0_10, %c0_11] : memref<16x128xf32, #tpu.memory_space<vmem>>, vector<16x128xf32>
      %c0_12 = arith.constant 0 : index
      %c0_13 = arith.constant 0 : index
      %13 = vector.load %arg4[%c0_12, %c0_13] : memref<1x128xf32, #tpu.memory_space<vmem>>, vector<1x128xf32>
      %14 = vector.broadcast %13 : vector<1x128xf32> to vector<16x128xf32>
      %15 = arith.addf %12, %14 : vector<16x128xf32>
      %cst_14 = arith.constant 0.000000e+00 : f32
      %16 = vector.broadcast %cst_14 : f32 to vector<16x128xf32>
      %17 = arith.cmpf ogt, %15, %16 : vector<16x128xf32>
      %cst_15 = arith.constant 0.00999999977 : f32
      %18 = vector.broadcast %cst_15 : f32 to vector<16x128xf32>
      %19 = arith.mulf %18, %15 : vector<16x128xf32>
      %20 = arith.select %17, %15, %19 : vector<16x128xi1>, vector<16x128xf32>
      %c0_16 = arith.constant 0 : index
      %c0_17 = arith.constant 0 : index
      %21 = vector.load %arg5[%c0_16, %c0_17] : memref<16x128xf32, #tpu.memory_space<vmem>>, vector<16x128xf32>
      tpu.vector_store %arg5[%c0_16, %c0_17], %20 {strides = array<i32>} : memref<16x128xf32, #tpu.memory_space<vmem>>, vector<16x128xf32>,
    } else {
    }
    return
  }
  func.func @transform_0(%arg0: i32, %arg1: i32) -> (i32, i32) {
    %c0_i32 = arith.constant 0 : i32
    return %arg0, %arg1 : i32, i32
  }
  func.func @transform_1(%arg0: i32, %arg1: i32) -> (i32, i32) {
    %c0_i32 = arith.constant 0 : i32
    %c0_i32_0 = arith.constant 0 : i32
    return %arg1, %c0_i32 : i32, i32
  }
  func.func @transform_2(%arg0: i32, %arg1: i32) -> (i32, i32) {
    %c0_i32 = arith.constant 0 : i32
    %c0_i32_0 = arith.constant 0 : i32
    %c0_i32_1 = arith.constant 0 : i32
    return %c0_i32, %c0_i32_0 : i32, i32
  }
  func.func @transform_3(%arg0: i32, %arg1: i32) -> (i32, i32) {
    %c0_i32 = arith.constant 0 : i32
    %c0_i32_0 = arith.constant 0 : i32
    return %arg0, %c0_i32 : i32, i32
  }
}

</mosaic_0001>

<llo_original>
// kernel: gcn_forward.3
$region0: #{gcn_forward.3}
  #allocation0 [shape = 'u32[]', space=smem, size = 0x4, offset = 0x4, fixed_abs, tag = 'smem constant byte address 0x4 - core index']
  #allocation1 [shape = 'u32[144,128]{1,0:T(1,128)}', space=vmem, size = 0x12000, scoped, tag = 'internal scratch']
  %s0 = inlined_call_operand.vmem [shape: bf16[16,16], index: 0, kind: input, shape index: {}]
  %s1 = inlined_call_operand.vmem [shape: bf16[16,128], index: 1, kind: input, shape index: {}]
  %s2 = inlined_call_operand.vmem [shape: f32[1,128], index: 2, kind: input, shape index: {}]
  %s3 = inlined_call_operand.hbm [shape: f32[16,128], index: 3, kind: output, shape index: {}]
  %s4 = sld [smem:[#allocation0]]
  $region30: #{gcn_forward.3} parent=0
    _
  %s6 = ssub.s32 1, %s4
  %s7 = scalar_select 0, %s6, %s4
  $region1: #{gcn_forward.3} parent=0
    #allocation2 [shape = 'u8[8192]{0}', space=vmem, size = 0x2000, scoped, tag = 'output window, operand 0, single buffered']
    #allocation3 [shape = 's32[1]{0}', space=sflag, size = 0x4, scoped, tag = 'scoped memory for gcn_forward.3']
    %8 = vsyncpa [#allocation3], 0
    // Predicated region
    $region2: #{gcn_forward.3} parent=1 // pred_check
      _
    $region3: #{gcn_forward.3} parent=1 // pred_check_branch
      %10 = sbr.rel (0) target = $region5
    $region4: #{gcn_forward.3} parent=1 // pred_region
      _
    $region5: #{gcn_forward.3} parent=1 // pred_fallthru
      _
    // Predicated region
    $region6: #{gcn_forward.3} parent=1 // pred_check
      _
    $region7: #{gcn_forward.3} parent=1 // pred_check_branch
      %12 = sbr.rel (0) target = $region9
    $region8: #{gcn_forward.3} parent=1 // pred_region
      _
    $region9: #{gcn_forward.3} parent=1 // pred_fallthru
      _
    // Predicated region
    $region10: #{gcn_forward.3} parent=1 // pred_check
      _
    $region11: #{gcn_forward.3} parent=1 // pred_check_branch
      %14 = sbr.rel (0) target = $region13
    $region12: #{gcn_forward.3} parent=1 // pred_region
      _
    $region13: #{gcn_forward.3} parent=1 // pred_fallthru
      _
    %p16 = scmp.eq.s32.totalorder 0, 0
    // Predicated region
    $region14: #{gcn_forward.3} parent=1 // pred_check
      %p17 = pneg %p16
    $region15: #{gcn_forward.3} parent=1 // pred_check_branch
      %19 = sbr.rel (%p17) target = $region17
    $region16: #{gcn_forward.3} parent=1 // pred_region
      %20 = vst [vmem:[#allocation2] sm:$0xff] 0.0
      %21 = vst [vmem:[#allocation2 + $0x8] sm:$0xff] 0.0
    $region17: #{gcn_forward.3} parent=1 // pred_fallthru
      _
    %v22 = vld [vmem:[#allocation2] sm:$0xff]
    %v23 = vld [vmem:[#allocation2 + $0x8] sm:$0xff]
    %v24 = vld [vmem:[%s0] sm:$0xf]
    %v25 = vld [vmem:[%s0 + $0x4] sm:$0xf]
    %v26 = vld [vmem:[%s1] sm:$0xf]
    %v27 = vld [vmem:[%s1 + $0x4] sm:$0xf]
    %v30 = vunpack.c.l.b16 %v24
    %v31 = vunpack.c.l.b16 %v25
    %v32 = vpack.c.b16 %v31, %v30
    %v35 = vunpack.c.l.b16 %v26
    %v36 = vunpack.c.l.b16 %v27
    %v37 = vpack.c.b16 %v36, %v35
    %vm39 = vcmask 130048
    %v41 = vsel %vm39, %v32, 0
    %43 = vmatprep.subr.bf16.mxu0 0
    %44 = vmatpush1.bf16.msra.mxu0 %v37
    %45 = vmatprep.subr.bf16.mxu0 0
    %46 = vmatpush1.bf16.msra.mxu0 0
    %47 = vmatprep.subr.bf16.mxu0 0
    %48 = vmatpush1.bf16.msra.mxu0 0
    %49 = vmatprep.subr.bf16.mxu0 0
    %50 = vmatpush1.bf16.msra.mxu0 0
    %51 = vmatprep.subr.bf16.mxu0 0
    %52 = vmatpush1.bf16.msra.mxu0 0
    %53 = vmatprep.subr.bf16.mxu0 0
    %54 = vmatpush1.bf16.msra.mxu0 0
    %55 = vmatprep.subr.bf16.mxu0 0
    %56 = vmatpush1.bf16.msra.mxu0 0
    %57 = vmatprep.subr.bf16.mxu0 0
    %58 = vmatpush1.bf16.msra.mxu0 0
    %59 = vmatprep.subr.bf16.mxu0 0
    %60 = vmatpush1.bf16.msra.mxu0 0
    %61 = vmatprep.subr.bf16.mxu0 0
    %62 = vmatpush1.bf16.msra.mxu0 0
    %63 = vmatprep.subr.bf16.mxu0 0
    %64 = vmatpush1.bf16.msra.mxu0 0
    %65 = vmatprep.subr.bf16.mxu0 0
    %66 = vmatpush1.bf16.msra.mxu0 0
    %67 = vmatprep.subr.bf16.mxu0 0
    %68 = vmatpush1.bf16.msra.mxu0 0
    %69 = vmatprep.subr.bf16.mxu0 0
    %70 = vmatpush1.bf16.msra.mxu0 0
    %71 = vmatprep.subr.bf16.mxu0 0
    %72 = vmatpush1.bf16.msra.mxu0 0
    %73 = vmatprep.subr.bf16.mxu0 0
    %74 = vmatpush1.bf16.msra.mxu0 0
    %75 = vmatprep.mubr.bf16.mxu0 0
    %76 = vmatmul.mubr.bf16.gmra.mrb[0].mxu0 %v41
    %v77 = vpop.f32.mrb[0].mxu0
    %v78 = vadd.f32 0.0, %v77
    %v79 = vpop.f32.mrb[0].mxu0
    %v80 = vpop.f32.mrb[0].mxu0
    %v81 = vadd.f32 0.0, %v80
    %v82 = vpop.f32.mrb[0].mxu0
    %83 = vdwg.mxu0
    %v84 = vadd.f32 %v22, %v78
    %v85 = vadd.f32 %v23, %v81
    %86 = vst [vmem:[#allocation2] sm:$0xff] %v84
    %87 = vst [vmem:[#allocation2 + $0x8] sm:$0xff] %v85
    // Predicated region
    $region18: #{gcn_forward.3} parent=1 // pred_check
      %p88 = pneg %p16
    $region19: #{gcn_forward.3} parent=1 // pred_check_branch
      %90 = sbr.rel (%p88) target = $region21
    $region20: #{gcn_forward.3} parent=1 // pred_region
      %v91 = vld [vmem:[#allocation2] sm:$0xff]
      %v92 = vld [vmem:[#allocation2 + $0x8] sm:$0xff]
      %v93 = vld [vmem:[%s2] sm:$0x1]
      %v95 = vlaneseq
      %v96 = vshrl.u32 %v95, 7
      %v97 = vsub.s32 0, %v96
      %v98 = vrot.slane %v93, %v97
      %v100 = vadd.f32 %v91, %v98
      %v101 = vadd.f32 %v92, %v98
      %vm102 = vcmp.gt.f32.partialorder %v100, 0.0
      %vm103 = vcmp.gt.f32.partialorder %v101, 0.0
      %v104 = vmul.f32 %v100, 0.01
      %v105 = vmul.f32 %v101, 0.01
      %v106 = vsel %vm102, %v100, %v104
      %v107 = vsel %vm103, %v101, %v105
      %108 = vst [vmem:[#allocation2] sm:$0xff] %v106
      %109 = vst [vmem:[#allocation2 + $0x8] sm:$0xff] %v107
    $region21: #{gcn_forward.3} parent=1 // pred_fallthru
      _
    // Predicated region
    $region22: #{gcn_forward.3} parent=1 // pred_check
      _
    $region23: #{gcn_forward.3} parent=1 // pred_check_branch
      %111 = sbr.rel (0) target = $region25
    $region24: #{gcn_forward.3} parent=1 // pred_region
      %s113 = ssub.s32 256, 256
      %114 = vsyncadd [#allocation3], %s113
      %s115 = sshll.u32 [#allocation2], 4
      %s116 = int_to_ptr.vmem [resolvable:$true] %s115
      %121 = dma.vmem_to_hbm [thread:$0]  %s116, 256, %s3, [#allocation3], 128, 128, 8
    $region25: #{gcn_forward.3} parent=1 // pred_fallthru
      _
    // Predicated region
    $region26: #{gcn_forward.3} parent=1 // pred_check
      _
    $region27: #{gcn_forward.3} parent=1 // pred_check_branch
      %123 = sbr.rel (0) target = $region29
    $region28: #{gcn_forward.3} parent=1 // pred_region
      %124 = dma.done [#allocation3], 256
    $region29: #{gcn_forward.3} parent=1 // pred_fallthru
      _
    %125 = vsyncpa [#allocation3], 1

// kernel: gcn_forward.2
$region0: #{gcn_forward.2}
  #allocation0 [shape = 'u32[]', space=smem, size = 0x4, offset = 0x4, fixed_abs, tag = 'smem constant byte address 0x4 - core index']
  #allocation1 [shape = 'u32[144,128]{1,0:T(1,128)}', space=vmem, size = 0x12000, scoped, tag = 'internal scratch']
  #allocation2 [shape = 'f32[16,128]{1,0:T(8,128)}', space=vmem, size = 0x2000, scoped, tag = 'scratch operand']
  %s0 = inlined_call_operand.vmem [shape: bf16[16,16], index: 0, kind: input, shape index: {}]
  %s1 = inlined_call_operand.vmem [shape: bf16[16,128], index: 1, kind: input, shape index: {}]
  %s2 = inlined_call_operand.vmem [shape: bf16[128,128], index: 2, kind: input, shape index: {}]
  %s3 = inlined_call_operand.vmem [shape: f32[1,128], index: 3, kind: input, shape index: {}]
  %s4 = inlined_call_operand.vmem [shape: bf16[128,128], index: 4, kind: input, shape index: {}]
  %s5 = inlined_call_operand.vmem [shape: bf16[16,128], index: 5, kind: output, shape index: {}]
  %s6 = sld [smem:[#allocation0]]
  $region38: #{gcn_forward.2} parent=0
    _
  %s8 = ssub.s32 1, %s6
  %s9 = scalar_select 0, %s8, %s6
  // Predicated region
  $region2: #{gcn_forward.2} parent=0 // pred_check
    _
  $region3: #{gcn_forward.2} parent=0 // pred_check_branch
    %11 = sbr.rel (0) target = $region5
  $region4: #{gcn_forward.2} parent=0 // pred_region
    _
  $region5: #{gcn_forward.2} parent=0 // pred_fallthru
    _
  // Predicated region
  $region6: #{gcn_forward.2} parent=0 // pred_check
    _
  $region7: #{gcn_forward.2} parent=0 // pred_check_branch
    %13 = sbr.rel (0) target = $region9
  $region8: #{gcn_forward.2} parent=0 // pred_region
    _
  $region9: #{gcn_forward.2} parent=0 // pred_fallthru
    _
  // Predicated region
  $region10: #{gcn_forward.2} parent=0 // pred_check
    _
  $region11: #{gcn_forward.2} parent=0 // pred_check_branch
    %15 = sbr.rel (0) target = $region13
  $region12: #{gcn_forward.2} parent=0 // pred_region
    _
  $region13: #{gcn_forward.2} parent=0 // pred_fallthru
    _
  // Predicated region
  $region14: #{gcn_forward.2} parent=0 // pred_check
    _
  $region15: #{gcn_forward.2} parent=0 // pred_check_branch
    %17 = sbr.rel (0) target = $region17
  $region16: #{gcn_forward.2} parent=0 // pred_region
    _
  $region17: #{gcn_forward.2} parent=0 // pred_fallthru
    _
  // Predicated region
  $region18: #{gcn_forward.2} parent=0 // pred_check
    _
  $region19: #{gcn_forward.2} parent=0 // pred_check_branch
    %19 = sbr.rel (0) target = $region21
  $region20: #{gcn_forward.2} parent=0 // pred_region
    _
  $region21: #{gcn_forward.2} parent=0 // pred_fallthru
    _
  %p21 = scmp.eq.s32.totalorder 0, 0
  // Predicated region
  $region22: #{gcn_forward.2} parent=0 // pred_check
    %p22 = pneg %p21
  $region23: #{gcn_forward.2} parent=0 // pred_check_branch
    %24 = sbr.rel (%p22) target = $region25
  $region24: #{gcn_forward.2} parent=0 // pred_region
    %25 = vst [vmem:[#allocation2] sm:$0xff] 0.0
    %26 = vst [vmem:[#allocation2 + $0x8] sm:$0xff] 0.0
  $region25: #{gcn_forward.2} parent=0 // pred_fallthru
    _
  %v27 = vld [vmem:[#allocation2] sm:$0xff]
  %v28 = vld [vmem:[#allocation2 + $0x8] sm:$0xff]
  %v29 = vld [vmem:[%s0] sm:$0xf]
  %v30 = vld [vmem:[%s0 + $0x4] sm:$0xf]
  %v31 = vld [vmem:[%s1] sm:$0xf]
  %v32 = vld [vmem:[%s1 + $0x4] sm:$0xf]
  %v35 = vunpack.c.l.b16 %v29
  %v36 = vunpack.c.l.b16 %v30
  %v37 = vpack.c.b16 %v36, %v35
  %v40 = vunpack.c.l.b16 %v31
  %v41 = vunpack.c.l.b16 %v32
  %v42 = vpack.c.b16 %v41, %v40
  %vm44 = vcmask 130048
  %v46 = vsel %vm44, %v37, 0
  %48 = vmatprep.subr.bf16.mxu0 0
  %49 = vmatpush1.bf16.msra.mxu0 %v42
  %50 = vmatprep.subr.bf16.mxu0 0
  %51 = vmatpush1.bf16.msra.mxu0 0
  %52 = vmatprep.subr.bf16.mxu0 0
  %53 = vmatpush1.bf16.msra.mxu0 0
  %54 = vmatprep.subr.bf16.mxu0 0
  %55 = vmatpush1.bf16.msra.mxu0 0
  %56 = vmatprep.subr.bf16.mxu0 0
  %57 = vmatpush1.bf16.msra.mxu0 0
  %58 = vmatprep.subr.bf16.mxu0 0
  %59 = vmatpush1.bf16.msra.mxu0 0
  %60 = vmatprep.subr.bf16.mxu0 0
  %61 = vmatpush1.bf16.msra.mxu0 0
  %62 = vmatprep.subr.bf16.mxu0 0
  %63 = vmatpush1.bf16.msra.mxu0 0
  %64 = vmatprep.subr.bf16.mxu0 0
  %65 = vmatpush1.bf16.msra.mxu0 0
  %66 = vmatprep.subr.bf16.mxu0 0
  %67 = vmatpush1.bf16.msra.mxu0 0
  %68 = vmatprep.subr.bf16.mxu0 0
  %69 = vmatpush1.bf16.msra.mxu0 0
  %70 = vmatprep.subr.bf16.mxu0 0
  %71 = vmatpush1.bf16.msra.mxu0 0
  %72 = vmatprep.subr.bf16.mxu0 0
  %73 = vmatpush1.bf16.msra.mxu0 0
  %74 = vmatprep.subr.bf16.mxu0 0
  %75 = vmatpush1.bf16.msra.mxu0 0
  %76 = vmatprep.subr.bf16.mxu0 0
  %77 = vmatpush1.bf16.msra.mxu0 0
  %78 = vmatprep.subr.bf16.mxu0 0
  %79 = vmatpush1.bf16.msra.mxu0 0
  %80 = vmatprep.mubr.bf16.mxu0 0
  %81 = vmatmul.mubr.bf16.gmra.mrb[0].mxu0 %v46
  %v82 = vpop.f32.mrb[0].mxu0
  %v83 = vadd.f32 0.0, %v82
  %v84 = vpop.f32.mrb[0].mxu0
  %v85 = vpop.f32.mrb[0].mxu0
  %v86 = vadd.f32 0.0, %v85
  %v87 = vpop.f32.mrb[0].mxu0
  %88 = vdwg.mxu0
  %v89 = vadd.f32 %v27, %v83
  %v90 = vadd.f32 %v28, %v86
  %91 = vst [vmem:[#allocation2] sm:$0xff] %v89
  %92 = vst [vmem:[#allocation2 + $0x8] sm:$0xff] %v90
  // Predicated region
  $region26: #{gcn_forward.2} parent=0 // pred_check
    %p93 = pneg %p21
  $region27: #{gcn_forward.2} parent=0 // pred_check_branch
    %95 = sbr.rel (%p93) target = $region29
  $region28: #{gcn_forward.2} parent=0 // pred_region
    %v96 = vld [vmem:[#allocation2] sm:$0xff]
    %v97 = vld [vmem:[#allocation2 + $0x8] sm:$0xff]
    %v98 = vpack.c.bf16 %v97, %v96
    %v99 = vld [vmem:[%s2] sm:$0xf]
    %v100 = vld [vmem:[%s2 + $0x4] sm:$0xf]
    %v101 = vld [vmem:[%s2 + $0x8] sm:$0xf]
    %v102 = vld [vmem:[%s2 + $0xc] sm:$0xf]
    %v103 = vld [vmem:[%s2 + $0x10] sm:$0xf]
    %v104 = vld [vmem:[%s2 + $0x14] sm:$0xf]
    %v105 = vld [vmem:[%s2 + $0x18] sm:$0xf]
    %v106 = vld [vmem:[%s2 + $0x1c] sm:$0xf]
    %v107 = vld [vmem:[%s2 + $0x20] sm:$0xf]
    %v108 = vld [vmem:[%s2 + $0x24] sm:$0xf]
    %v109 = vld [vmem:[%s2 + $0x28] sm:$0xf]
    %v110 = vld [vmem:[%s2 + $0x2c] sm:$0xf]
    %v111 = vld [vmem:[%s2 + $0x30] sm:$0xf]
    %v112 = vld [vmem:[%s2 + $0x34] sm:$0xf]
    %v113 = vld [vmem:[%s2 + $0x38] sm:$0xf]
    %v114 = vld [vmem:[%s2 + $0x3c] sm:$0xf]
    %v115 = vld [vmem:[%s3] sm:$0x1]
    %v117 = vlaneseq
    %v118 = vshrl.u32 %v117, 7
    %v119 = vsub.s32 0, %v118
    %v120 = vrot.slane %v115, %v119
    %v138 = vunpack.c.l.b16 %v99
    %v139 = vunpack.c.l.b16 %v100
    %v140 = vunpack.c.l.b16 %v101
    %v141 = vunpack.c.l.b16 %v102
    %v142 = vunpack.c.l.b16 %v103
    %v143 = vunpack.c.l.b16 %v104
    %v144 = vunpack.c.l.b16 %v105
    %v145 = vunpack.c.l.b16 %v106
    %v146 = vunpack.c.l.b16 %v107
    %v147 = vunpack.c.l.b16 %v108
    %v148 = vunpack.c.l.b16 %v109
    %v149 = vunpack.c.l.b16 %v110
    %v150 = vunpack.c.l.b16 %v111
    %v151 = vunpack.c.l.b16 %v112
    %v152 = vunpack.c.l.b16 %v113
    %v153 = vunpack.c.l.b16 %v114
    %v154 = vpack.c.b16 %v139, %v138
    %v155 = vpack.c.b16 %v141, %v140
    %v156 = vpack.c.b16 %v143, %v142
    %v157 = vpack.c.b16 %v145, %v144
    %v158 = vpack.c.b16 %v147, %v146
    %v159 = vpack.c.b16 %v149, %v148
    %v160 = vpack.c.b16 %v151, %v150
    %v161 = vpack.c.b16 %v153, %v152
    %170 = vmatprep.subr.bf16.mxu0 0
    %171 = vmatpush1.bf16.msra.mxu0 %v154
    %172 = vmatprep.subr.bf16.mxu0 0
    %173 = vmatpush1.bf16.msra.mxu0 %v155
    %174 = vmatprep.subr.bf16.mxu0 0
    %175 = vmatpush1.bf16.msra.mxu0 %v156
    %176 = vmatprep.subr.bf16.mxu0 0
    %177 = vmatpush1.bf16.msra.mxu0 %v157
    %178 = vmatprep.subr.bf16.mxu0 0
    %179 = vmatpush1.bf16.msra.mxu0 %v158
    %180 = vmatprep.subr.bf16.mxu0 0
    %181 = vmatpush1.bf16.msra.mxu0 %v159
    %182 = vmatprep.subr.bf16.mxu0 0
    %183 = vmatpush1.bf16.msra.mxu0 %v160
    %184 = vmatprep.subr.bf16.mxu0 0
    %185 = vmatpush1.bf16.msra.mxu0 %v161
    %186 = vmatprep.subr.bf16.mxu0 0
    %187 = vmatpush1.bf16.msra.mxu0 0
    %188 = vmatprep.subr.bf16.mxu0 0
    %189 = vmatpush1.bf16.msra.mxu0 0
    %190 = vmatprep.subr.bf16.mxu0 0
    %191 = vmatpush1.bf16.msra.mxu0 0
    %192 = vmatprep.subr.bf16.mxu0 0
    %193 = vmatpush1.bf16.msra.mxu0 0
    %194 = vmatprep.subr.bf16.mxu0 0
    %195 = vmatpush1.bf16.msra.mxu0 0
    %196 = vmatprep.subr.bf16.mxu0 0
    %197 = vmatpush1.bf16.msra.mxu0 0
    %198 = vmatprep.subr.bf16.mxu0 0
    %199 = vmatpush1.bf16.msra.mxu0 0
    %200 = vmatprep.subr.bf16.mxu0 0
    %201 = vmatpush1.bf16.msra.mxu0 0
    %202 = vmatprep.mubr.bf16.mxu0 0
    %203 = vmatmul.mubr.bf16.gmra.mrb[0].mxu0 %v98
    %v204 = vpop.f32.mrb[0].mxu0
    %v205 = vadd.f32 %v120, %v204
    %v206 = vpop.f32.mrb[0].mxu0
    %v207 = vpop.f32.mrb[0].mxu0
    %v208 = vadd.f32 %v120, %v207
    %v209 = vpop.f32.mrb[0].mxu0
    %210 = vdwg.mxu0
    %vm211 = vcmp.gt.f32.partialorder %v205, 0.0
    %vm212 = vcmp.gt.f32.partialorder %v208, 0.0
    %v213 = vmul.f32 %v205, 0.01
    %v214 = vmul.f32 %v208, 0.01
    %v215 = vsel %vm211, %v205, %v213
    %v216 = vsel %vm212, %v208, %v214
    %v217 = vpack.c.bf16 %v216, %v215
    %v218 = vld [vmem:[%s4] sm:$0xf]
    %v219 = vld [vmem:[%s4 + $0x4] sm:$0xf]
    %v220 = vld [vmem:[%s4 + $0x8] sm:$0xf]
    %v221 = vld [vmem:[%s4 + $0xc] sm:$0xf]
    %v222 = vld [vmem:[%s4 + $0x10] sm:$0xf]
    %v223 = vld [vmem:[%s4 + $0x14] sm:$0xf]
    %v224 = vld [vmem:[%s4 + $0x18] sm:$0xf]
    %v225 = vld [vmem:[%s4 + $0x1c] sm:$0xf]
    %v226 = vld [vmem:[%s4 + $0x20] sm:$0xf]
    %v227 = vld [vmem:[%s4 + $0x24] sm:$0xf]
    %v228 = vld [vmem:[%s4 + $0x28] sm:$0xf]
    %v229 = vld [vmem:[%s4 + $0x2c] sm:$0xf]
    %v230 = vld [vmem:[%s4 + $0x30] sm:$0xf]
    %v231 = vld [vmem:[%s4 + $0x34] sm:$0xf]
    %v232 = vld [vmem:[%s4 + $0x38] sm:$0xf]
    %v233 = vld [vmem:[%s4 + $0x3c] sm:$0xf]
    %v250 = vunpack.c.l.b16 %v218
    %v251 = vunpack.c.l.b16 %v219
    %v252 = vunpack.c.l.b16 %v220
    %v253 = vunpack.c.l.b16 %v221
    %v254 = vunpack.c.l.b16 %v222
    %v255 = vunpack.c.l.b16 %v223
    %v256 = vunpack.c.l.b16 %v224
    %v257 = vunpack.c.l.b16 %v225
    %v258 = vunpack.c.l.b16 %v226
    %v259 = vunpack.c.l.b16 %v227
    %v260 = vunpack.c.l.b16 %v228
    %v261 = vunpack.c.l.b16 %v229
    %v262 = vunpack.c.l.b16 %v230
    %v263 = vunpack.c.l.b16 %v231
    %v264 = vunpack.c.l.b16 %v232
    %v265 = vunpack.c.l.b16 %v233
    %v266 = vpack.c.b16 %v251, %v250
    %v267 = vpack.c.b16 %v253, %v252
    %v268 = vpack.c.b16 %v255, %v254
    %v269 = vpack.c.b16 %v257, %v256
    %v270 = vpack.c.b16 %v259, %v258
    %v271 = vpack.c.b16 %v261, %v260
    %v272 = vpack.c.b16 %v263, %v262
    %v273 = vpack.c.b16 %v265, %v264
    %282 = vmatprep.subr.bf16.mxu0 0
    %283 = vmatpush1.bf16.msra.mxu0 %v266
    %284 = vmatprep.subr.bf16.mxu0 0
    %285 = vmatpush1.bf16.msra.mxu0 %v267
    %286 = vmatprep.subr.bf16.mxu0 0
    %287 = vmatpush1.bf16.msra.mxu0 %v268
    %288 = vmatprep.subr.bf16.mxu0 0
    %289 = vmatpush1.bf16.msra.mxu0 %v269
    %290 = vmatprep.subr.bf16.mxu0 0
    %291 = vmatpush1.bf16.msra.mxu0 %v270
    %292 = vmatprep.subr.bf16.mxu0 0
    %293 = vmatpush1.bf16.msra.mxu0 %v271
    %294 = vmatprep.subr.bf16.mxu0 0
    %295 = vmatpush1.bf16.msra.mxu0 %v272
    %296 = vmatprep.subr.bf16.mxu0 0
    %297 = vmatpush1.bf16.msra.mxu0 %v273
    %298 = vmatprep.subr.bf16.mxu0 0
    %299 = vmatpush1.bf16.msra.mxu0 0
    %300 = vmatprep.subr.bf16.mxu0 0
    %301 = vmatpush1.bf16.msra.mxu0 0
    %302 = vmatprep.subr.bf16.mxu0 0
    %303 = vmatpush1.bf16.msra.mxu0 0
    %304 = vmatprep.subr.bf16.mxu0 0
    %305 = vmatpush1.bf16.msra.mxu0 0
    %306 = vmatprep.subr.bf16.mxu0 0
    %307 = vmatpush1.bf16.msra.mxu0 0
    %308 = vmatprep.subr.bf16.mxu0 0
    %309 = vmatpush1.bf16.msra.mxu0 0
    %310 = vmatprep.subr.bf16.mxu0 0
    %311 = vmatpush1.bf16.msra.mxu0 0
    %312 = vmatprep.subr.bf16.mxu0 0
    %313 = vmatpush1.bf16.msra.mxu0 0
    %314 = vmatprep.mubr.bf16.mxu0 0
    %315 = vmatmul.mubr.bf16.gmra.mrb[0].mxu0 %v217
    %v316 = vpop.f32.mrb[0].mxu0
    %v317 = vadd.f32 0.0, %v316
    %v318 = vpop.f32.mrb[0].mxu0
    %v319 = vpop.f32.mrb[0].mxu0
    %v320 = vadd.f32 0.0, %v319
    %v321 = vpop.f32.mrb[0].mxu0
    %322 = vdwg.mxu0
    %v323 = vpack.c.bf16 %v320, %v317
    %v325 = vunpack.c.l.b16 %v323
    %v326 = vunpack.c.h.b16 %v323
    %v327 = vpack.c.b16 %v325, %v325
    %v328 = vpack.c.b16 %v326, %v326
    %331 = vst [vmem:[%s5] sm:$0xf] %v327
    %332 = vst [vmem:[%s5 + $0x4] sm:$0xf] %v328
  $region29: #{gcn_forward.2} parent=0 // pred_fallthru
    _
  // Predicated region
  $region30: #{gcn_forward.2} parent=0 // pred_check
    _
  $region31: #{gcn_forward.2} parent=0 // pred_check_branch
    %334 = sbr.rel (0) target = $region33
  $region32: #{gcn_forward.2} parent=0 // pred_region
    _
  $region33: #{gcn_forward.2} parent=0 // pred_fallthru
    _
  // Predicated region
  $region34: #{gcn_forward.2} parent=0 // pred_check
    _
  $region35: #{gcn_forward.2} parent=0 // pred_check_branch
    %336 = sbr.rel (0) target = $region37
  $region36: #{gcn_forward.2} parent=0 // pred_region
    _
  $region37: #{gcn_forward.2} parent=0 // pred_fallthru
    _

</llo_original>
